<compile_context>
chip_gen: v5e
topology: v5e:2x2
jax: 0.10.0
libtpu: 0.0.40
codegen_flags: <defaults>
</compile_context>

<pallas_src>
import jax
import jax.numpy as jnp
from jax.experimental import pallas as pl
from jax.experimental.pallas import tpu as pltpu


def _invert_kernel(x_ref, o_ref):
    # Pure elementwise hot path on the VPU, in the native dtype.
    o_ref[...] = 1 - x_ref[...]


_LANES = (1024, 512, 256, 128)  # lane-dense candidates (multiples of 128)


def _default_block_bytes() -> int:
    """Per-generation block target: ~2 MiB v5e, ~4 MiB v6e, ~8 MiB v7x."""
    try:
        kind = jax.devices()[0].device_kind.lower()
    except Exception:
        kind = ""
    if "v5" in kind:
        return 2 << 20
    if "7" in kind:  # "TPU7x" / "TPU v7x"
        return 8 << 20
    return 4 << 20   # v6e and unknown


def color_inverter(x: jax.Array, *,
                   block_bytes: int | None = None,
                   min_pallas_bytes: int | None = None,
                   donate_input: bool = False) -> jax.Array:
    """Pallas implementation of ColorInverter.forward: returns 1 - x.

    Output has identical shape and dtype.  Matches the PyTorch module exactly
    (literally `1 - x`); note that this is a meaningful color inversion only
    for float images in [0, 1] -- integer dtypes follow the same wrapping
    semantics as the reference module.
    """
    orig_shape = x.shape
    dtype = x.dtype
    itemsize = jnp.dtype(dtype).itemsize
    total = x.size

    if block_bytes is None:
        block_bytes = _default_block_bytes()
    if min_pallas_bytes is None:
        min_pallas_bytes = block_bytes

    # Fast path: for sub-block tensors XLA's fused elementwise is already at
    # the HBM roofline; a pallas_call launch would be pure overhead.
    if total == 0 or total * itemsize < min_pallas_bytes:
        return 1 - x

    # Copy-free lane-dense view: largest lane width that divides the flat size.
    lane = next((l for l in _LANES if total % l == 0), None)
    if lane is None:
        # Flat size not a multiple of 128: padding + slicing would ~3x the HBM
        # traffic of this bandwidth-bound op, so plain XLA (already at the
        # roofline) is the right call for this rare ragged case.
        return 1 - x

    rows = total // lane
    sublane = {1: 32, 2: 16}.get(itemsize, 8)  # rows packed per vreg

    # Dtype-aware row tile: keep every block at ~block_bytes regardless of dtype.
    tm_target = max(sublane, (block_bytes // (lane * itemsize) // sublane) * sublane)
    if rows <= tm_target:
        tm = rows  # single full-height block (block dim == array dim is legal)
    else:
        tm = tm_target

    # v7x megacore: make sure the ("parallel",) axis has >= 2 steps so both
    # TensorCores get work (measured neutral on v5e/v6e).
    if pl.cdiv(rows, tm) < 2 and rows >= 2 * sublane:
        tm = max(sublane, pl.cdiv(pl.cdiv(rows, 2), sublane) * sublane)

    grid = (pl.cdiv(rows, tm),)

    # Contiguous flatten of a row-major array: no data movement.
    x2d = x.reshape(rows, lane)

    out2d = pl.pallas_call(
        _invert_kernel,
        out_shape=jax.ShapeDtypeStruct((rows, lane), dtype),
        grid_spec=pltpu.PrefetchScalarGridSpec(
            num_scalar_prefetch=0,
            grid=grid,
            in_specs=[pl.BlockSpec((tm, lane), lambda i: (i, 0))],
            out_specs=pl.BlockSpec((tm, lane), lambda i: (i, 0)),
        ),
        compiler_params=pltpu.CompilerParams(
            dimension_semantics=("parallel",),
            # Largest (v7x) block is 8 MiB; in+out double-buffered = 32 MiB.
            # 40 MiB leaves headroom, lifts v5e's 16 MiB scoped default, and
            # stays well under physical VMEM on every generation.
            vmem_limit_bytes=40 << 20,
        ),
        cost_estimate=pl.CostEstimate(
            flops=total,                      # rows * lane == total (no padding)
            transcendentals=0,
            bytes_accessed=2 * total * itemsize,
        ),
        # Callers that donate x (e.g. jit(..., donate_argnums=...)) can write
        # in place; off by default so non-donated args don't force an extra
        # copy-on-write of the whole tensor.
        input_output_aliases=({0: 0} if donate_input else {}),
    )(x2d)

    return out2d.reshape(orig_shape)


if __name__ == "__main__":
    key = jax.random.PRNGKey(0)
    k1, k2, k3, k4 = jax.random.split(key, 4)

    # 1) Small NCHW input, default path (tiny tensor -> XLA fast path).
    x = jax.random.uniform(k1, (2, 4, 16, 16), dtype=jnp.float32)
    y = jax.block_until_ready(color_inverter(x))
    assert y.shape == x.shape and y.dtype == x.dtype
    assert jnp.max(jnp.abs(y - (1.0 - x))) < 1e-6

    # 2) Same small input forced through the Pallas kernel (single block,
    #    block dims == full array dims).
    y_p = jax.block_until_ready(color_inverter(x, min_pallas_bytes=0))
    assert y_p.shape == x.shape and y_p.dtype == x.dtype
    assert jnp.max(jnp.abs(y_p - (1.0 - x))) < 1e-6

    # 3) Multi-step Pallas grid (2 full blocks) at a small, lane-aligned shape.
    x3 = jax.random.uniform(k2, (2, 4, 32, 64), dtype=jnp.float32)
    y3 = jax.block_until_ready(
        color_inverter(x3, min_pallas_bytes=0, block_bytes=32 << 10))
    assert jnp.max(jnp.abs(y3 - (1.0 - x3))) < 1e-6

    # 4) Ragged flat size (not a multiple of 128) in bf16: XLA fallback path.
    x4 = jax.random.uniform(k3, (1, 3, 17, 23), dtype=jnp.bfloat16)
    y4 = jax.block_until_ready(color_inverter(x4, min_pallas_bytes=0))
    assert y4.shape == x4.shape and y4.dtype == x4.dtype
    assert jnp.max(jnp.abs(y4.astype(jnp.float32)
                           - (1.0 - x4.astype(jnp.float32)))) < 1e-2

    # 5) Lane-aligned bf16 through the Pallas kernel (sublane-packed dtype).
    x5 = jax.random.uniform(k4, (2, 4, 16, 32), dtype=jnp.bfloat16)
    y5 = jax.block_until_ready(color_inverter(x5, min_pallas_bytes=0))
    assert y5.shape == x5.shape and y5.dtype == x5.dtype
    assert jnp.max(jnp.abs(y5.astype(jnp.float32)
                           - (1.0 - x5.astype(jnp.float32)))) < 1e-2

    print("KERNEL_OK")
</pallas_src>

<mosaic_0001>
module attributes {stable_mosaic.version = 11 : i64} {
  func.func @_invert_kernel(%arg0: i32, %arg1: memref<2x1024xf32, #tpu.memory_space<vmem>>, %arg2: memref<2x1024xf32, #tpu.memory_space<vmem>>) attributes {dimension_semantics = [#tpu.dimension_semantics<parallel>], iteration_bounds = array<i64: 1>, scalar_prefetch = 0 : i64, scratch_operands = 0 : i64, tpu.core_type = #tpu.core_type<tc>, window_params = [{transform_indices = @transform_0, window_bounds = array<i64: 2, 1024>}, {transform_indices = @transform_1, window_bounds = array<i64: 2, 1024>}]} {
    %c0 = arith.constant 0 : index
    %c0_0 = arith.constant 0 : index
    %0 = vector.load %arg1[%c0, %c0_0] : memref<2x1024xf32, #tpu.memory_space<vmem>>, vector<2x1024xf32>
    %cst = arith.constant 1.000000e+00 : f32
    %1 = vector.broadcast %cst : f32 to vector<2x1024xf32>
    %2 = arith.subf %1, %0 : vector<2x1024xf32>
    %c0_1 = arith.constant 0 : index
    %c0_2 = arith.constant 0 : index
    %3 = vector.load %arg2[%c0_1, %c0_2] : memref<2x1024xf32, #tpu.memory_space<vmem>>, vector<2x1024xf32>
    tpu.vector_store %arg2[%c0_1, %c0_2], %2 {strides = array<i32>} : memref<2x1024xf32, #tpu.memory_space<vmem>>, vector<2x1024xf32>,
    return
  }
  func.func @transform_0(%arg0: i32) -> (i32, i32) {
    %c0_i32 = arith.constant 0 : i32
    %c0_i32_0 = arith.constant 0 : i32
    return %arg0, %c0_i32 : i32, i32
  }
  func.func @transform_1(%arg0: i32) -> (i32, i32) {
    %c0_i32 = arith.constant 0 : i32
    %c0_i32_0 = arith.constant 0 : i32
    return %arg0, %c0_i32 : i32, i32
  }
}

</mosaic_0001>

<llo_original>
// kernel: tpu_custom_call.1
$region0: #{tpu_custom_call.1}
  #allocation0 [shape = 'u32[]', space=smem, size = 0x4, offset = 0x4, fixed_abs, tag = 'smem constant byte address 0x4 - core index']
  #allocation1 [shape = 'u32[72,128]{1,0:T(1,128)}', space=vmem, size = 0x9000, scoped, tag = 'internal scratch']
  %s0 = inlined_call_operand.hbm [shape: f32[2,1024], index: 0, kind: input, shape index: {}]
  %s1 = inlined_call_operand.hbm [shape: f32[2,1024], index: 1, kind: output, shape index: {}]
  %s2 = sld [smem:[#allocation0]]
  $region18: #{tpu_custom_call.1} parent=0
    _
  %s4 = ssub.s32 1, %s2
  %s5 = scalar_select 0, %s4, %s2
  $region1: #{tpu_custom_call.1} parent=0
    #allocation2 [shape = 'u8[8192]{0}', space=vmem, size = 0x2000, scoped, tag = 'input window, operand 0, single buffered']
    #allocation3 [shape = 's32[1]{0}', space=sflag, size = 0x4, scoped, tag = 'scoped memory for tpu_custom_call.1']
    #allocation4 [shape = 's32[1]{0}', space=sflag, size = 0x4, scoped, tag = 'scoped memory for tpu_custom_call.1']
    #allocation5 [shape = 'u8[8192]{0}', space=vmem, size = 0x2000, scoped, tag = 'output window, operand 0, single buffered']
    %6 = vsyncpa [#allocation3], 0
    %7 = vsyncpa [#allocation4], 0
    // Predicated region
    $region2: #{tpu_custom_call.1} parent=1 // pred_check
      _
    $region3: #{tpu_custom_call.1} parent=1 // pred_check_branch
      %9 = sbr.rel (0) target = $region5
    $region4: #{tpu_custom_call.1} parent=1 // pred_region
      %11 = vsyncadd [#allocation3], 0
      %s13 = sshll.u32 %s0, 4
      %s14 = int_to_ptr.hbm [resolvable:$true] %s13
      %s15 = sshll.u32 [#allocation2], 4
      %s16 = int_to_ptr.vmem [resolvable:$true] %s15
      %18 = dma.hbm_to_vmem [thread:$0]  %s14, 256, %s16, [#allocation3]
    $region5: #{tpu_custom_call.1} parent=1 // pred_fallthru
      _
    // Predicated region
    $region6: #{tpu_custom_call.1} parent=1 // pred_check
      _
    $region7: #{tpu_custom_call.1} parent=1 // pred_check_branch
      %20 = sbr.rel (0) target = $region9
    $region8: #{tpu_custom_call.1} parent=1 // pred_region
      %22 = dma.done [#allocation3], 256
    $region9: #{tpu_custom_call.1} parent=1 // pred_fallthru
      _
    %v23 = vld [vmem:[#allocation2] sm:$0xff]
    %v24 = vld [vmem:[#allocation2 + $0x8] sm:$0xff]
    %v25 = vsub.f32 1.0, %v23
    %v26 = vsub.f32 1.0, %v24
    %27 = vst [vmem:[#allocation5] sm:$0xff] %v25
    %28 = vst [vmem:[#allocation5 + $0x8] sm:$0xff] %v26
    // Predicated region
    $region10: #{tpu_custom_call.1} parent=1 // pred_check
      _
    $region11: #{tpu_custom_call.1} parent=1 // pred_check_branch
      %30 = sbr.rel (0) target = $region13
    $region12: #{tpu_custom_call.1} parent=1 // pred_region
      %32 = vsyncadd [#allocation4], 0
      %s34 = sshll.u32 [#allocation5], 4
      %s35 = int_to_ptr.vmem [resolvable:$true] %s34
      %s36 = sshll.u32 %s1, 4
      %s37 = int_to_ptr.hbm [resolvable:$true] %s36
      %39 = dma.vmem_to_hbm [thread:$0]  %s35, 256, %s37, [#allocation4]
    $region13: #{tpu_custom_call.1} parent=1 // pred_fallthru
      _
    // Predicated region
    $region14: #{tpu_custom_call.1} parent=1 // pred_check
      _
    $region15: #{tpu_custom_call.1} parent=1 // pred_check_branch
      %41 = sbr.rel (0) target = $region17
    $region16: #{tpu_custom_call.1} parent=1 // pred_region
      %43 = dma.done [#allocation4], 256
    $region17: #{tpu_custom_call.1} parent=1 // pred_fallthru
      _
    %44 = vsyncpa [#allocation3], 1
    %45 = vsyncpa [#allocation4], 1

</llo_original>
